<compile_context>
chip_gen: v5e
topology: v5e:2x2
jax: 0.10.0
libtpu: 0.0.40
codegen_flags: <defaults>
</compile_context>

<pallas_src>
import functools

import jax
import jax.numpy as jnp
from jax.experimental import pallas as pl
from jax.experimental.pallas import tpu as pltpu

_MIB = 1024 * 1024


# ----------------------------------------------------------------------------
# In-kernel helpers
# ----------------------------------------------------------------------------
def _accumulate_partial(sq, out_ref):
    """out_ref[8, D] <- sublane-grouped partial sums of sq (rows, D)."""
    rows, d = sq.shape
    if rows % 8 == 0:
        # Pure VPU: fold 8-row groups onto each other (no cross-lane work).
        out_ref[...] = sq.reshape(rows // 8, 8, d).sum(axis=0)
    else:
        # Odd-row full-extent block: reduce rows fully, park in sublane 0.
        colsum = jnp.sum(sq, axis=0, keepdims=True)                 # (1, d)
        ridx = jax.lax.broadcasted_iota(jnp.int32, (8, d), 0)
        out_ref[...] = jnp.where(ridx == 0, colsum, jnp.float32(0.0))


def _sq_diff(o, t, row_start=None, row_bound=None):
    """f32 (o - t)**2, zeroing rows whose global row index >= row_bound."""
    diff = o.astype(jnp.float32) - t.astype(jnp.float32)
    if row_start is not None:
        rows, d = diff.shape
        rid = jax.lax.broadcasted_iota(jnp.int32, (rows, d), 0)
        diff = jnp.where(rid + row_start < row_bound, diff, jnp.float32(0.0))
    return diff * diff


def _flat_kernel(o_ref, t_ref, out_ref, *, block_rows, total_rows, need_mask):
    start = pl.program_id(0) * block_rows if need_mask else None
    sq = _sq_diff(o_ref[...], t_ref[...], start, total_rows)
    _accumulate_partial(sq, out_ref)


def _fold_kernel(o_ref, t_ref, out_ref, *, tile_t, total_t, need_mask):
    start = pl.program_id(1) * tile_t if need_mask else None
    sq = _sq_diff(o_ref[...], t_ref[...], start, total_t)
    _accumulate_partial(sq, out_ref)


def _manual_kernel(o_ref, t_hbm, out_ref, t_buf, dma_sem, *, tile_t, lag):
    # Target stays in HBM; DMA the lag-shifted window for this (batch, T-block)
    # into a VMEM staging buffer.  tile_t divides T_out, so no OOB DMA.
    b = pl.program_id(0)
    j = pl.program_id(1)
    start = lag + j * tile_t
    if lag % 8 == 0 and tile_t % 8 == 0:
        start = pl.multiple_of(start, 8)
    cp = pltpu.make_async_copy(t_hbm.at[b, pl.ds(start, tile_t), :], t_buf, dma_sem)
    cp.start()
    cp.wait()
    sq = _sq_diff(o_ref[...], t_buf[...])
    _accumulate_partial(sq, out_ref)


# ----------------------------------------------------------------------------
# Host-side sizing helpers
# ----------------------------------------------------------------------------
def _vmem_capacity_bytes():
    try:
        cap = getattr(pltpu.get_tpu_info(), "vmem_capacity_bytes", None)
        if cap:
            return int(cap)
    except Exception:
        pass
    return 64 * _MIB          # conservative default (v7x per-TensorCore VMEM)


def _row_budget(width, o_item, t_item, vmem_cap, max_block_bytes):
    """Rows/block s.t. 2x double-buffered inputs + f32 temporaries fit VMEM."""
    per_row = width * (2 * (o_item + t_item) + 3 * 4)     # in-bufs + f32 temps
    rows = int(vmem_cap * 0.55) // max(per_row, 1)
    rows = min(rows, max_block_bytes // max(width * max(o_item, t_item), 1))
    return max(8, (rows // 8) * 8)


def _vmem_limit(rows, width, o_item, t_item, vmem_cap, extra_bytes=0):
    need = (rows * width * (2 * (o_item + t_item) + 3 * 4)
            + 2 * 8 * width * 4 + extra_bytes + 2 * _MIB)
    return int(min(vmem_cap * 0.75, max(need, 32 * _MIB)))


def _largest_aligned_divisor(n, cap):
    """Largest multiple-of-8 divisor of n that is <= cap (0 if none)."""
    best, d, limit = 0, 8, min(n, cap)
    while d <= limit:
        if n % d == 0:
            best = d
        d += 8
    return best


def _finalize(partials, n_elems):
    return jnp.sum(partials) / jnp.float32(n_elems)


# ----------------------------------------------------------------------------
# The three streaming paths
# ----------------------------------------------------------------------------
def _run_flat(out2, tgt2, n_elems, o_item, t_item, vmem_cap, row_budget):
    R, C = out2.shape
    rows = R if R <= row_budget else row_budget
    nb = pl.cdiv(R, rows)
    need_mask = (R % rows) != 0
    kernel = functools.partial(_flat_kernel, block_rows=rows, total_rows=R,
                               need_mask=need_mask)
    partials = pl.pallas_call(
        kernel,
        out_shape=jax.ShapeDtypeStruct((nb, 8, C), jnp.float32),
        grid_spec=pltpu.PrefetchScalarGridSpec(
            num_scalar_prefetch=0,
            grid=(nb,),
            in_specs=[pl.BlockSpec((rows, C), lambda i: (i, 0)),
                      pl.BlockSpec((rows, C), lambda i: (i, 0))],
            out_specs=pl.BlockSpec((None, 8, C), lambda i: (i, 0, 0)),
        ),
        compiler_params=pltpu.CompilerParams(
            dimension_semantics=("parallel",),
            vmem_limit_bytes=_vmem_limit(rows, C, o_item, t_item, vmem_cap),
        ),
        cost_estimate=pl.CostEstimate(
            flops=3 * R * C, transcendentals=0,
            bytes_accessed=R * C * (o_item + t_item) + int(nb) * 8 * C * 4),
    )(out2, tgt2)
    return _finalize(partials, n_elems)


def _run_fold(output, target, lag, tile_t, n_elems, o_item, t_item, vmem_cap):
    B, T_out, D = output.shape
    lag_blk = lag // tile_t
    nt = pl.cdiv(T_out, tile_t)
    need_mask = (T_out % tile_t) != 0
    kernel = functools.partial(_fold_kernel, tile_t=tile_t, total_t=T_out,
                               need_mask=need_mask)
    partials = pl.pallas_call(
        kernel,
        out_shape=jax.ShapeDtypeStruct((B, nt, 8, D), jnp.float32),
        grid_spec=pltpu.PrefetchScalarGridSpec(
            num_scalar_prefetch=0,
            grid=(B, nt),
            in_specs=[pl.BlockSpec((None, tile_t, D), lambda b, j: (b, j, 0)),
                      pl.BlockSpec((None, tile_t, D),
                                   lambda b, j: (b, j + lag_blk, 0))],
            out_specs=pl.BlockSpec((None, None, 8, D), lambda b, j: (b, j, 0, 0)),
        ),
        compiler_params=pltpu.CompilerParams(
            dimension_semantics=("parallel", "parallel"),
            vmem_limit_bytes=_vmem_limit(tile_t, D, o_item, t_item, vmem_cap),
        ),
        cost_estimate=pl.CostEstimate(
            flops=3 * n_elems, transcendentals=0,
            bytes_accessed=n_elems * (o_item + t_item) + B * int(nt) * 8 * D * 4),
    )(output, target)
    return _finalize(partials, n_elems)


def _run_manual(output, target, lag, tile_t, n_elems, o_item, t_item, vmem_cap):
    B, T_out, D = output.shape
    nt = T_out // tile_t                    # exact by construction
    kernel = functools.partial(_manual_kernel, tile_t=tile_t, lag=lag)
    extra = tile_t * D * t_item             # manual target staging buffer
    partials = pl.pallas_call(
        kernel,
        out_shape=jax.ShapeDtypeStruct((B, nt, 8, D), jnp.float32),
        grid_spec=pltpu.PrefetchScalarGridSpec(
            num_scalar_prefetch=0,
            grid=(B, nt),
            in_specs=[pl.BlockSpec((None, tile_t, D), lambda b, j: (b, j, 0)),
                      pl.BlockSpec(memory_space=pl.ANY)],
            out_specs=pl.BlockSpec((None, None, 8, D), lambda b, j: (b, j, 0, 0)),
            scratch_shapes=[pltpu.VMEM((tile_t, D), target.dtype),
                            pltpu.SemaphoreType.DMA],
        ),
        compiler_params=pltpu.CompilerParams(
            dimension_semantics=("parallel", "parallel"),
            vmem_limit_bytes=_vmem_limit(tile_t, D, o_item, t_item, vmem_cap,
                                         extra_bytes=extra),
        ),
        cost_estimate=pl.CostEstimate(
            flops=3 * n_elems, transcendentals=0,
            bytes_accessed=n_elems * (o_item + t_item) + B * nt * 8 * D * 4),
    )(output, target)
    return _finalize(partials, n_elems)


# ----------------------------------------------------------------------------
# Public entry point
# ----------------------------------------------------------------------------
def mse3d(output, target, *,
          max_block_bytes=8 * _MIB,
          fold_min_bytes=512 * 1024,
          manual_min_bytes=128 * 1024):
    """Pallas equivalent of MSE3D.forward(output, target) -> scalar f32."""
    B, T_out, D = output.shape
    Bt, T_tgt, Dt = target.shape
    assert B == Bt and D == Dt and T_tgt >= T_out
    lag = T_tgt - T_out
    n_elems = B * T_out * D
    if n_elems == 0:
        return jnp.float32(jnp.nan)         # mean of an empty tensor

    o_item = jnp.dtype(output.dtype).itemsize
    t_item = jnp.dtype(target.dtype).itemsize
    blk_item = max(o_item, t_item)
    vmem_cap = _vmem_capacity_bytes()
    row_budget = _row_budget(D, o_item, t_item, vmem_cap, max_block_bytes)

    if lag > 0:
        # Path B: lag expressible as whole T-blocks -> fold into target's
        # index_map.  Zero extra HBM traffic, both streams auto-pipelined.
        # Accepted on block BYTES so wide-D inputs fold even with small tile_t.
        fold_tile = _largest_aligned_divisor(lag, min(row_budget, T_out))
        if fold_tile and fold_tile * D * blk_item >= fold_min_bytes:
            return _run_fold(output, target, lag, fold_tile, n_elems,
                             o_item, t_item, vmem_cap)

        # Path C: sublane-aligned lag -> manually DMA the lag-shifted target
        # window from HBM (P4 style); output stays on the auto-pipeline.
        if lag % 8 == 0:
            if T_out <= row_budget:
                man_tile = T_out
            else:
                man_tile = _largest_aligned_divisor(T_out, row_budget)
            if man_tile and man_tile * D * blk_item >= manual_min_bytes:
                try:
                    return _run_manual(output, target, lag, man_tile, n_elems,
                                       o_item, t_item, vmem_cap)
                except Exception:
                    pass    # fall back to the copy path below

        # Path D (fallback): materialize the lag slice (one extra HBM
        # read+write of target) and stream it through the flat path.
        # TODO(synk): sublane-unaligned lags still pay this copy; an
        # Element/BoundedSlice T-window could remove it.
        target = jax.lax.slice_in_dim(target, lag, T_tgt, axis=1)

    # Path A: flattened (B*T_out, D) rows, cdiv grid + tail masking,
    # VMEM-budgeted blocks.  Collapsing major dims is a free reshape.
    out2 = output.reshape(B * T_out, D)
    tgt2 = target.reshape(B * T_out, D)
    return _run_flat(out2, tgt2, n_elems, o_item, t_item, vmem_cap, row_budget)


# ----------------------------------------------------------------------------
# Demo / self-test
# ----------------------------------------------------------------------------
if __name__ == "__main__":
    def ref_mse(o, t):
        lg = t.shape[1] - o.shape[1]
        return jnp.mean((o - t[:, lg:, :]) ** 2)

    key = jax.random.PRNGKey(0)
    # Small configs chosen to exercise every code path:
    #   1) lag>0, tiny blocks            -> copy fallback (path D)
    #   2) fold threshold disabled       -> index_map fold (path B)
    #   3) fold off, manual threshold 0  -> manual HBM-window DMA (path C)
    #   4) sublane-unaligned lag, odd T  -> copy fallback + odd-row reduce
    #   5) lag == 0                      -> flat streaming path (path A)
    cases = [
        dict(shape=(2, 16, 24, 128)),
        dict(shape=(2, 16, 24, 128), kw=dict(fold_min_bytes=0)),
        dict(shape=(2, 16, 24, 128), kw=dict(fold_min_bytes=1 << 60,
                                             manual_min_bytes=0)),
        dict(shape=(2, 13, 18, 96)),
        dict(shape=(2, 16, 16, 128)),
    ]
    for i, case in enumerate(cases):
        B, T_out, T_tgt, D = case["shape"]
        key, ko, kt = jax.random.split(key, 3)
        out = jax.random.normal(ko, (B, T_out, D), dtype=jnp.float32)
        tgt = jax.random.normal(kt, (B, T_tgt, D), dtype=jnp.float32)
        got = jax.block_until_ready(mse3d(out, tgt, **case.get("kw", {})))
        want = ref_mse(out, tgt)
        assert jnp.allclose(got, want, rtol=1e-5, atol=1e-6), (i, got, want)
    print("KERNEL_OK")
</pallas_src>

<mosaic_0001>
module attributes {stable_mosaic.version = 11 : i64} {
  func.func @_flat_kernel(%arg0: i32, %arg1: memref<32x128xf32, #tpu.memory_space<vmem>>, %arg2: memref<32x128xf32, #tpu.memory_space<vmem>>, %arg3: memref<1x8x128xf32, #tpu.memory_space<vmem>>) attributes {dimension_semantics = [#tpu.dimension_semantics<parallel>], iteration_bounds = array<i64: 1>, scalar_prefetch = 0 : i64, scratch_operands = 0 : i64, tpu.core_type = #tpu.core_type<tc>, window_params = [{transform_indices = @transform_0, window_bounds = array<i64: 32, 128>}, {transform_indices = @transform_1, window_bounds = array<i64: 32, 128>}, {transform_indices = @transform_2, window_bounds = array<i64: 1, 8, 128>}]} {
    %c0 = arith.constant 0 : index
    %c0_0 = arith.constant 0 : index
    %0 = vector.load %arg1[%c0, %c0_0] : memref<32x128xf32, #tpu.memory_space<vmem>>, vector<32x128xf32>
    %c0_1 = arith.constant 0 : index
    %c0_2 = arith.constant 0 : index
    %1 = vector.load %arg2[%c0_1, %c0_2] : memref<32x128xf32, #tpu.memory_space<vmem>>, vector<32x128xf32>
    %2 = arith.subf %0, %1 : vector<32x128xf32>
    %3 = arith.mulf %2, %2 : vector<32x128xf32>
    %4 = vector.shape_cast %3 : vector<32x128xf32> to vector<4x8x128xf32>
    %cst = arith.constant dense<0.000000e+00> : vector<8x128xf32>
    %5 = vector.multi_reduction <add>, %4, %cst [0] : vector<4x8x128xf32> to vector<8x128xf32>
    %c0_3 = arith.constant 0 : index
    %c0_4 = arith.constant 0 : index
    %c0_5 = arith.constant 0 : index
    %6 = vector.load %arg3[%c0_3, %c0_4, %c0_5] : memref<1x8x128xf32, #tpu.memory_space<vmem>>, vector<1x8x128xf32>
    %7 = vector.shape_cast %6 : vector<1x8x128xf32> to vector<8x128xf32>
    %8 = vector.shape_cast %5 : vector<8x128xf32> to vector<1x8x128xf32>
    tpu.vector_store %arg3[%c0_3, %c0_4, %c0_5], %8 {strides = array<i32>} : memref<1x8x128xf32, #tpu.memory_space<vmem>>, vector<1x8x128xf32>,
    return
  }
  func.func @transform_0(%arg0: i32) -> (i32, i32) {
    %c0_i32 = arith.constant 0 : i32
    %c0_i32_0 = arith.constant 0 : i32
    return %arg0, %c0_i32 : i32, i32
  }
  func.func @transform_1(%arg0: i32) -> (i32, i32) {
    %c0_i32 = arith.constant 0 : i32
    %c0_i32_0 = arith.constant 0 : i32
    return %arg0, %c0_i32 : i32, i32
  }
  func.func @transform_2(%arg0: i32) -> (i32, i32, i32) {
    %c0_i32 = arith.constant 0 : i32
    %c0_i32_0 = arith.constant 0 : i32
    %c0_i32_1 = arith.constant 0 : i32
    return %arg0, %c0_i32, %c0_i32_0 : i32, i32, i32
  }
}

</mosaic_0001>

<llo_original>
// kernel: tpu_custom_call.1
$region0: #{tpu_custom_call.1}
  #allocation0 [shape = 'u32[]', space=smem, size = 0x4, offset = 0x4, fixed_abs, tag = 'smem constant byte address 0x4 - core index']
  #allocation1 [shape = 'u32[72,128]{1,0:T(1,128)}', space=vmem, size = 0x9000, scoped, tag = 'internal scratch']
  %s0 = inlined_call_operand.hbm [shape: f32[32,128], index: 0, kind: input, shape index: {}]
  %s1 = inlined_call_operand.hbm [shape: f32[32,128], index: 1, kind: input, shape index: {}]
  %s2 = inlined_call_operand.hbm [shape: f32[1,8,128], index: 2, kind: output, shape index: {}]
  %s3 = sld [smem:[#allocation0]]
  $region26: #{tpu_custom_call.1} parent=0
    _
  %s5 = ssub.s32 1, %s3
  %s6 = scalar_select 0, %s5, %s3
  $region1: #{tpu_custom_call.1} parent=0
    #allocation2 [shape = 'u8[16384]{0}', space=vmem, size = 0x4000, scoped, tag = 'input window, operand 0, single buffered']
    #allocation3 [shape = 's32[1]{0}', space=sflag, size = 0x4, scoped, tag = 'scoped memory for tpu_custom_call.1']
    #allocation4 [shape = 's32[1]{0}', space=sflag, size = 0x4, scoped, tag = 'scoped memory for tpu_custom_call.1']
    #allocation5 [shape = 'u8[16384]{0}', space=vmem, size = 0x4000, scoped, tag = 'input window, operand 1, single buffered']
    #allocation6 [shape = 's32[1]{0}', space=sflag, size = 0x4, scoped, tag = 'scoped memory for tpu_custom_call.1']
    #allocation7 [shape = 'u8[4096]{0}', space=vmem, size = 0x1000, scoped, tag = 'output window, operand 0, single buffered']
    %7 = vsyncpa [#allocation3], 0
    %8 = vsyncpa [#allocation6], 0
    %9 = vsyncpa [#allocation4], 0
    // Predicated region
    $region2: #{tpu_custom_call.1} parent=1 // pred_check
      _
    $region3: #{tpu_custom_call.1} parent=1 // pred_check_branch
      %11 = sbr.rel (0) target = $region5
    $region4: #{tpu_custom_call.1} parent=1 // pred_region
      %13 = vsyncadd [#allocation3], 0
      %s14 = sshll.u32 %s0, 4
      %s15 = int_to_ptr.hbm [resolvable:$true] %s14
      %s16 = sshll.u32 [#allocation2], 4
      %s17 = int_to_ptr.vmem [resolvable:$true] %s16
      %22 = dma.hbm_to_vmem [thread:$0]  %s15, 512, %s17, [#allocation3], 128, 128, 8
    $region5: #{tpu_custom_call.1} parent=1 // pred_fallthru
      _
    // Predicated region
    $region6: #{tpu_custom_call.1} parent=1 // pred_check
      _
    $region7: #{tpu_custom_call.1} parent=1 // pred_check_branch
      %24 = sbr.rel (0) target = $region9
    $region8: #{tpu_custom_call.1} parent=1 // pred_region
      %26 = vsyncadd [#allocation6], 0
      %s27 = sshll.u32 %s1, 4
      %s28 = int_to_ptr.hbm [resolvable:$true] %s27
      %s29 = sshll.u32 [#allocation5], 4
      %s30 = int_to_ptr.vmem [resolvable:$true] %s29
      %35 = dma.hbm_to_vmem [thread:$0]  %s28, 512, %s30, [#allocation6], 128, 128, 8
    $region9: #{tpu_custom_call.1} parent=1 // pred_fallthru
      _
    // Predicated region
    $region10: #{tpu_custom_call.1} parent=1 // pred_check
      _
    $region11: #{tpu_custom_call.1} parent=1 // pred_check_branch
      %37 = sbr.rel (0) target = $region13
    $region12: #{tpu_custom_call.1} parent=1 // pred_region
      %39 = dma.done [#allocation3], 512
    $region13: #{tpu_custom_call.1} parent=1 // pred_fallthru
      _
    // Predicated region
    $region14: #{tpu_custom_call.1} parent=1 // pred_check
      _
    $region15: #{tpu_custom_call.1} parent=1 // pred_check_branch
      %41 = sbr.rel (0) target = $region17
    $region16: #{tpu_custom_call.1} parent=1 // pred_region
      %43 = dma.done [#allocation6], 512
    $region17: #{tpu_custom_call.1} parent=1 // pred_fallthru
      _
    %v44 = vld [vmem:[#allocation2] sm:$0xff]
    %v45 = vld [vmem:[#allocation2 + $0x8] sm:$0xff]
    %v46 = vld [vmem:[#allocation2 + $0x10] sm:$0xff]
    %v47 = vld [vmem:[#allocation2 + $0x18] sm:$0xff]
    %v48 = vld [vmem:[#allocation5] sm:$0xff]
    %v49 = vld [vmem:[#allocation5 + $0x8] sm:$0xff]
    %v50 = vld [vmem:[#allocation5 + $0x10] sm:$0xff]
    %v51 = vld [vmem:[#allocation5 + $0x18] sm:$0xff]
    %v52 = vsub.f32 %v44, %v48
    %v53 = vsub.f32 %v45, %v49
    %v54 = vsub.f32 %v46, %v50
    %v55 = vsub.f32 %v47, %v51
    %v56 = vmul.f32 %v52, %v52
    %v57 = vmul.f32 %v53, %v53
    %v58 = vmul.f32 %v54, %v54
    %v59 = vmul.f32 %v55, %v55
    %v60 = vadd.f32 %v56, %v57
    %v61 = vadd.f32 %v60, %v58
    %v62 = vadd.f32 %v61, %v59
    %63 = vst [vmem:[#allocation7] sm:$0xff] %v62
    // Predicated region
    $region18: #{tpu_custom_call.1} parent=1 // pred_check
      _
    $region19: #{tpu_custom_call.1} parent=1 // pred_check_branch
      %65 = sbr.rel (0) target = $region21
    $region20: #{tpu_custom_call.1} parent=1 // pred_region
      %67 = vsyncadd [#allocation4], 0
      %s69 = sshll.u32 [#allocation7], 4
      %s70 = int_to_ptr.vmem [resolvable:$true] %s69
      %s71 = sshll.u32 %s2, 4
      %s72 = int_to_ptr.hbm [resolvable:$true] %s71
      %74 = dma.vmem_to_hbm [thread:$0]  %s70, 128, %s72, [#allocation4]
    $region21: #{tpu_custom_call.1} parent=1 // pred_fallthru
      _
    // Predicated region
    $region22: #{tpu_custom_call.1} parent=1 // pred_check
      _
    $region23: #{tpu_custom_call.1} parent=1 // pred_check_branch
      %76 = sbr.rel (0) target = $region25
    $region24: #{tpu_custom_call.1} parent=1 // pred_region
      %78 = dma.done [#allocation4], 128
    $region25: #{tpu_custom_call.1} parent=1 // pred_fallthru
      _
    %79 = vsyncpa [#allocation3], 1
    %80 = vsyncpa [#allocation6], 1
    %81 = vsyncpa [#allocation4], 1

</llo_original>
